<compile_context>
chip_gen: v6e
topology: v6e:2x2x1
jax: 0.10.0
libtpu: 0.0.40
codegen_flags: <defaults>
</compile_context>

<pallas_src>
import jax
import jax.numpy as jnp
from jax import lax
from jax.experimental import pallas as pl
from jax.experimental.pallas import tpu as pltpu


def _logistic_kernel(x_ref, w_ref, o_ref):
    # x_ref: [TILE_N, D]  (VMEM, streamed per grid step)
    # w_ref: [1, D]       (VMEM, resident across grid steps)
    # o_ref: [1, TILE_N]  (VMEM, lane-dense output tile)
    logits = lax.dot_general(
        w_ref[...],
        x_ref[...],
        dimension_numbers=(((1,), (1,)), ((), ())),  # contract on D (last axis of both)
        preferred_element_type=jnp.float32,
    )  # -> [1, TILE_N]
    o_ref[...] = jax.nn.sigmoid(logits).astype(o_ref.dtype)


def logistic_regression_forward(x, weight, *, tile_n=512):
    """x: [N, w_num] float32; weight: [1, w_num] float32 (PyTorch nn.Linear layout).

    Returns sigmoid(x @ weight.T) with shape [N, 1], matching the PyTorch module.
    """
    n, d = x.shape
    assert weight.shape == (1, d)

    # Pick the tile: full batch if it is small, otherwise pad N up to a multiple
    # of tile_n so every block satisfies the (8, 128) tiling rule (512 % 128 == 0,
    # 512 % 8 == 0; D stays full-extent which is always allowed).
    if n <= tile_n:
        tile_n = n
        n_padded = n
        xp = x
    else:
        n_padded = pl.cdiv(n, tile_n) * tile_n
        xp = jnp.pad(x, ((0, n_padded - n), (0, 0))) if n_padded != n else x

    grid = (n_padded // tile_n,)

    out = pl.pallas_call(
        _logistic_kernel,
        out_shape=jax.ShapeDtypeStruct((1, n_padded), jnp.float32),
        grid_spec=pl.GridSpec(
            grid=grid,
            in_specs=[
                # x: stream one (tile_n, D) batch slab per grid step.
                pl.BlockSpec((tile_n, d), lambda i: (i, 0)),
                # weight: same [1, D] block every step -> stays resident in VMEM.
                pl.BlockSpec((1, d), lambda i: (0, 0)),
            ],
            # Lane-dense output: batch along the 128-lane axis.
            out_specs=pl.BlockSpec((1, tile_n), lambda i: (0, i)),
        ),
        compiler_params=pltpu.CompilerParams(
            # Independent batch tiles -> megacore sharding on v7x.
            dimension_semantics=("parallel",),
        ),
    )(xp, weight)

    # Free layout plumbing: drop padding rows, present PyTorch's [N, 1] shape.
    return out[0, :n].reshape(n, 1)


if __name__ == "__main__":
    # Small, deterministic example consistent with the module:
    # batch N = 8 samples, w_num = 32 features.
    # (At this size the kernel is pure launch overhead; the structure above is
    # what matters for realistic N, D.)
    N, W_NUM = 8, 32

    key = jax.random.PRNGKey(0)
    kx, kw = jax.random.split(key)

    x = jax.random.normal(kx, (N, W_NUM), dtype=jnp.float32)

    # Deterministic parameter init mimicking nn.Linear default:
    # uniform(-1/sqrt(w_num), 1/sqrt(w_num)), shape [1, w_num].
    bound = 1.0 / (W_NUM ** 0.5)
    weight = jax.random.uniform(
        kw, (1, W_NUM), dtype=jnp.float32, minval=-bound, maxval=bound
    )

    out = logistic_regression_forward(x, weight)
    jax.block_until_ready(out)

    # Sanity check against plain-JAX reference.
    ref = jax.nn.sigmoid(x @ weight.T)
    assert out.shape == (N, 1)
    assert jnp.allclose(out, ref, atol=1e-6, rtol=1e-6)

    print("KERNEL_OK")
</pallas_src>

<mosaic_0001>
module attributes {stable_mosaic.version = 11 : i64} {
  func.func @_logistic_kernel(%arg0: i32, %arg1: memref<8x32xf32, #tpu.memory_space<vmem>>, %arg2: memref<1x32xf32, #tpu.memory_space<vmem>>, %arg3: memref<1x8xf32, #tpu.memory_space<vmem>>) attributes {dimension_semantics = [#tpu.dimension_semantics<parallel>], iteration_bounds = array<i64: 1>, scalar_prefetch = 0 : i64, scratch_operands = 0 : i64, tpu.core_type = #tpu.core_type<tc>, window_params = [{transform_indices = @transform_0, window_bounds = array<i64: 8, 32>}, {pipeline_mode = #tpu.pipeline_mode<synchronous>, transform_indices = @transform_1, window_bounds = array<i64: 1, 32>}, {transform_indices = @transform_2, window_bounds = array<i64: 1, 8>}]} {
    %c0 = arith.constant 0 : index
    %c0_0 = arith.constant 0 : index
    %0 = vector.load %arg2[%c0, %c0_0] : memref<1x32xf32, #tpu.memory_space<vmem>>, vector<1x32xf32>
    %c0_1 = arith.constant 0 : index
    %c0_2 = arith.constant 0 : index
    %1 = vector.load %arg1[%c0_1, %c0_2] : memref<8x32xf32, #tpu.memory_space<vmem>>, vector<8x32xf32>
    %cst = arith.constant dense<0.000000e+00> : vector<1x8xf32>
    %2 = tpu.matmul %0, %1, %cst {dimension_numbers = #tpu.dot_dimension_numbers<[1], [1], [0], [0], [0, 0, 1, 0], [], []>} : vector<1x32xf32>, vector<8x32xf32>, vector<1x8xf32> -> vector<1x8xf32>
    %3 = arith.negf %2 : vector<1x8xf32>
    %4 = math.exp %3 : vector<1x8xf32>
    %cst_3 = arith.constant 1.000000e+00 : f32
    %5 = vector.broadcast %cst_3 : f32 to vector<1x8xf32>
    %6 = arith.addf %5, %4 : vector<1x8xf32>
    %7 = arith.divf %5, %6 : vector<1x8xf32>
    %c0_4 = arith.constant 0 : index
    %c0_5 = arith.constant 0 : index
    %8 = vector.load %arg3[%c0_4, %c0_5] : memref<1x8xf32, #tpu.memory_space<vmem>>, vector<1x8xf32>
    tpu.vector_store %arg3[%c0_4, %c0_5], %7 {strides = array<i32>} : memref<1x8xf32, #tpu.memory_space<vmem>>, vector<1x8xf32>,
    return
  }
  func.func @transform_0(%arg0: i32) -> (i32, i32) {
    %c0_i32 = arith.constant 0 : i32
    %c0_i32_0 = arith.constant 0 : i32
    return %arg0, %c0_i32 : i32, i32
  }
  func.func @transform_1(%arg0: i32) -> (i32, i32) {
    %c0_i32 = arith.constant 0 : i32
    %c0_i32_0 = arith.constant 0 : i32
    %c0_i32_1 = arith.constant 0 : i32
    return %c0_i32, %c0_i32_0 : i32, i32
  }
  func.func @transform_2(%arg0: i32) -> (i32, i32) {
    %c0_i32 = arith.constant 0 : i32
    %c0_i32_0 = arith.constant 0 : i32
    return %c0_i32, %arg0 : i32, i32
  }
}

</mosaic_0001>

<llo_original>
// kernel: tpu_custom_call.1
$region0: #{tpu_custom_call.1}
  #allocation0 [shape = 'u32[]', space=smem, size = 0x4, offset = 0x4, fixed_abs, tag = 'smem constant byte address 0x4 - core index']
  #allocation1 [shape = 'u32[144,128]{1,0:T(1,128)}', space=vmem, size = 0x12000, scoped, tag = 'internal scratch']
  %s0 = inlined_call_operand.hbm [shape: f32[8,32], index: 0, kind: input, shape index: {}]
  %s1 = inlined_call_operand.vmem [shape: f32[1,32], index: 1, kind: input, shape index: {}]
  %s2 = inlined_call_operand.hbm [shape: f32[1,8], index: 2, kind: output, shape index: {}]
  %s3 = sld [smem:[#allocation0]]
  $region22: #{tpu_custom_call.1} parent=0
    _
  %s5 = ssub.s32 1, %s3
  %s6 = scalar_select 0, %s5, %s3
  $region1: #{tpu_custom_call.1} parent=0
    #allocation2 [shape = 'u8[4096]{0}', space=vmem, size = 0x1000, scoped, tag = 'input window, operand 0, single buffered']
    #allocation3 [shape = 's32[1]{0}', space=sflag, size = 0x4, scoped, tag = 'scoped memory for tpu_custom_call.1']
    #allocation4 [shape = 's32[1]{0}', space=sflag, size = 0x4, scoped, tag = 'scoped memory for tpu_custom_call.1']
    #allocation5 [shape = 'u8[512]{0}', space=vmem, size = 0x400, scoped, tag = 'output window, operand 0, single buffered']
    %7 = vsyncpa [#allocation3], 0
    %8 = vsyncpa [#allocation4], 0
    // Predicated region
    $region2: #{tpu_custom_call.1} parent=1 // pred_check
      _
    $region3: #{tpu_custom_call.1} parent=1 // pred_check_branch
      %10 = sbr.rel (0) target = $region5
    $region4: #{tpu_custom_call.1} parent=1 // pred_region
      %s12 = ssub.s32 128, 128
      %13 = vsyncadd [#allocation3], %s12
      %s15 = sshll.u32 [#allocation2], 4
      %s16 = int_to_ptr.vmem [resolvable:$true] %s15
      %18 = dma.hbm_to_vmem [thread:$0]  %s0, 128, %s16, [#allocation3]
    $region5: #{tpu_custom_call.1} parent=1 // pred_fallthru
      _
    // Predicated region
    $region6: #{tpu_custom_call.1} parent=1 // pred_check
      _
    $region7: #{tpu_custom_call.1} parent=1 // pred_check_branch
      %20 = sbr.rel (0) target = $region9
    $region8: #{tpu_custom_call.1} parent=1 // pred_region
      _
    $region9: #{tpu_custom_call.1} parent=1 // pred_fallthru
      _
    // Predicated region
    $region10: #{tpu_custom_call.1} parent=1 // pred_check
      _
    $region11: #{tpu_custom_call.1} parent=1 // pred_check_branch
      %22 = sbr.rel (0) target = $region13
    $region12: #{tpu_custom_call.1} parent=1 // pred_region
      %23 = dma.done [#allocation3], 128
    $region13: #{tpu_custom_call.1} parent=1 // pred_fallthru
      _
    %v24 = vld [vmem:[%s1] sm:$0x1]
    %v25 = vld [vmem:[#allocation2] sm:$0xff]
    %vm26 = vcmask 261120
    %v28 = vsel %vm26, %v24, 0
    %v31 = vsel %vm26, %v25, 0
    %33 = vmatprep.subr.mxu0 0.0
    %34 = vmatpush1.xpose.msra.mxu0 0.0
    %35 = vmatprep.subr.mxu0 0.0
    %36 = vmatpush1.xpose.msra.mxu0 0.0
    %37 = vmatprep.subr.mxu0 0.0
    %38 = vmatpush1.xpose.msra.mxu0 0.0
    %39 = vmatprep.subr.mxu0 0.0
    %40 = vmatpush1.xpose.msra.mxu0 0.0
    %41 = vmatprep.subr.mxu0 0.0
    %42 = vmatpush1.xpose.msra.mxu0 0.0
    %43 = vmatprep.subr.mxu0 0.0
    %44 = vmatpush1.xpose.msra.mxu0 0.0
    %45 = vmatprep.subr.mxu0 0.0
    %46 = vmatpush1.xpose.msra.mxu0 0.0
    %47 = vmatprep.subr.mxu0 0.0
    %48 = vmatpush1.xpose.msra.mxu0 0.0
    %49 = vmatprep.subr.mxu0 0.0
    %50 = vmatpush1.xpose.msra.mxu0 0.0
    %51 = vmatprep.subr.mxu0 0.0
    %52 = vmatpush1.xpose.msra.mxu0 0.0
    %53 = vmatprep.subr.mxu0 0.0
    %54 = vmatpush1.xpose.msra.mxu0 0.0
    %55 = vmatprep.subr.mxu0 0.0
    %56 = vmatpush1.xpose.msra.mxu0 0.0
    %57 = vmatprep.subr.mxu0 0.0
    %58 = vmatpush1.xpose.msra.mxu0 0.0
    %59 = vmatprep.subr.mxu0 0.0
    %60 = vmatpush1.xpose.msra.mxu0 0.0
    %61 = vmatprep.subr.mxu0 0.0
    %62 = vmatpush1.xpose.msra.mxu0 0.0
    %63 = vmatprep.subr.mxu0 0.0
    %64 = vmatpush1.xpose.msra.mxu0 %v31
    %65 = vmatprep.subr.mxu0 0.0
    %66 = vmatpush2.xpose.msra.mxu0 0.0
    %67 = vmatprep.subr.mxu0 0.0
    %68 = vmatpush2.xpose.msra.mxu0 0.0
    %69 = vmatprep.subr.mxu0 0.0
    %70 = vmatpush2.xpose.msra.mxu0 0.0
    %71 = vmatprep.subr.mxu0 0.0
    %72 = vmatpush2.xpose.msra.mxu0 0.0
    %73 = vmatprep.subr.mxu0 0.0
    %74 = vmatpush2.xpose.msra.mxu0 0.0
    %75 = vmatprep.subr.mxu0 0.0
    %76 = vmatpush2.xpose.msra.mxu0 0.0
    %77 = vmatprep.subr.mxu0 0.0
    %78 = vmatpush2.xpose.msra.mxu0 0.0
    %79 = vmatprep.subr.mxu0 0.0
    %80 = vmatpush2.xpose.msra.mxu0 0.0
    %81 = vmatprep.subr.mxu0 0.0
    %82 = vmatpush2.xpose.msra.mxu0 0.0
    %83 = vmatprep.subr.mxu0 0.0
    %84 = vmatpush2.xpose.msra.mxu0 0.0
    %85 = vmatprep.subr.mxu0 0.0
    %86 = vmatpush2.xpose.msra.mxu0 0.0
    %87 = vmatprep.subr.mxu0 0.0
    %88 = vmatpush2.xpose.msra.mxu0 0.0
    %89 = vmatprep.subr.mxu0 0.0
    %90 = vmatpush2.xpose.msra.mxu0 0.0
    %91 = vmatprep.subr.mxu0 0.0
    %92 = vmatpush2.xpose.msra.mxu0 0.0
    %93 = vmatprep.subr.mxu0 0.0
    %94 = vmatpush2.xpose.msra.mxu0 0.0
    %95 = vmatprep.subr.mxu0 0.0
    %96 = vmatpush2.xpose.msra.mxu0 0.0
    %97 = vmatprep.mubr.f32.mxu0 0.0
    %98 = vmatmul.mubr.f32.gmra.mxu0 %v28
    %v99 = vpop.f32.mrf.mxu0
    %v100 = vadd.f32 0.0, %v99
    %v101 = vpop.f32.mrf.mxu0
    %102 = vdwg.mxu0
    %v103 = vxor.u32 %v100, 2147483648
    %v104 = vmul.f32 %v103, 1.442695
    %v105 = vpow.pop %v104
    %v106 = vadd.f32 %v105, 1.0
    %v107 = vrcp.pop %v106
    %v108 = vmul.f32 1.0, %v107
    %vm109 = vcmask 57344
    %110 = vst.msk [vmem:[#allocation5] sm:$0x1] %vm109, %v108
    // Predicated region
    $region14: #{tpu_custom_call.1} parent=1 // pred_check
      _
    $region15: #{tpu_custom_call.1} parent=1 // pred_check_branch
      %112 = sbr.rel (0) target = $region17
    $region16: #{tpu_custom_call.1} parent=1 // pred_region
      %s114 = ssub.s32 16, 16
      %115 = vsyncadd [#allocation4], %s114
      %s117 = sshll.u32 [#allocation5], 4
      %s118 = int_to_ptr.vmem [resolvable:$true] %s117
      %120 = dma.vmem_to_hbm [thread:$0]  %s118, 16, %s2, [#allocation4]
    $region17: #{tpu_custom_call.1} parent=1 // pred_fallthru
      _
    // Predicated region
    $region18: #{tpu_custom_call.1} parent=1 // pred_check
      _
    $region19: #{tpu_custom_call.1} parent=1 // pred_check_branch
      %122 = sbr.rel (0) target = $region21
    $region20: #{tpu_custom_call.1} parent=1 // pred_region
      %123 = dma.done [#allocation4], 16
    $region21: #{tpu_custom_call.1} parent=1 // pred_fallthru
      _
    %124 = vsyncpa [#allocation3], 1
    %125 = vsyncpa [#allocation4], 1

</llo_original>
